<compile_context>
chip_gen: v6e
topology: v6e:2x2x1
jax: 0.10.0
libtpu: 0.0.40
codegen_flags: <defaults>
</compile_context>

<pallas_src>
import functools

import jax
import jax.numpy as jnp
from jax.experimental import pallas as pl
from jax.experimental.pallas import tpu as pltpu


def _attention_kernel(enc_ref, dec_ref, we_ref, wd_ref, wf_ref, bias_ref,
                      bf_ref, awe_ref, alpha_ref, *, valid_pixels):
    tb, p_pad, e_dim = enc_ref.shape
    enc = enc_ref[...]                                   # (TB, Pp, E) compute dtype
    dec = dec_ref[...]                                   # (TB, D)     compute dtype

    # att1: one flat MXU matmul (TB*Pp, E) @ (E, A_pad) -> full MXU row
    # utilization instead of TB separate (Pp, E) matmuls.
    att1 = jnp.dot(enc.reshape(tb * p_pad, e_dim), we_ref[...],
                   preferred_element_type=jnp.float32)   # (TB*Pp, A_pad) f32
    a_pad = att1.shape[-1]
    att1 = att1.reshape(tb, p_pad, a_pad)                # (TB, Pp, A_pad) f32

    # att2 = decoder_hidden @ Wd^T
    att2 = jnp.dot(dec, wd_ref[...],
                   preferred_element_type=jnp.float32)   # (TB, A_pad) f32

    # relu(att1 + att2 + (be + bd))  -- f32 elementwise on the VPU
    h = jnp.maximum(att1 + att2[:, None, :] + bias_ref[...], 0.0)

    # full_att (out_features == 1): broadcast-mul by the wf row + lane reduce,
    # plus the scalar bias from SMEM.  Dense (TB, Pp) tile.
    att = jnp.sum(h * wf_ref[...], axis=-1) + bf_ref[0]  # (TB, Pp) f32

    # Mask the host-side pixel padding before the softmax.
    if valid_pixels < p_pad:
        col = jax.lax.broadcasted_iota(jnp.int32, (tb, p_pad), 1)
        att = jnp.where(col < valid_pixels, att, jnp.float32(-1e30))

    # Numerically-stable softmax over pixels (f32); denominator reciprocal on
    # the otherwise-idle EUP slot.
    m = jnp.max(att, axis=-1, keepdims=True)
    e = jnp.exp(att - m)
    denom = jnp.sum(e, axis=-1, keepdims=True)
    alpha = e * pl.reciprocal(denom, approx=True)        # (TB, Pp) f32

    # attention_weighted_encoding on the VPU/XLU: broadcast-mul + sublane
    # reduce over pixels.  Keeps the M=1 matvec off the MXU and alpha in f32
    # (bf16 * f32 promotes to f32).  Padded pixels have alpha == 0.
    awe = jnp.sum(enc * alpha[:, :, None], axis=1)       # (TB, E) f32

    awe_ref[...] = awe.astype(awe_ref.dtype)
    alpha_ref[...] = alpha.astype(alpha_ref.dtype)


def attention_forward(encoder_out, decoder_hidden, params, *,
                      compute_dtype=jnp.bfloat16, batch_tile=None,
                      vmem_limit_bytes=None):
    """encoder_out: (B, P, E), decoder_hidden: (B, D) -> (awe (B,E), alpha (B,P))."""
    B, P, E = encoder_out.shape
    D = decoder_hidden.shape[1]
    we, be = params["we"], params["be"]
    wd, bd = params["wd"], params["bd"]
    wf, bf = params["wf"], params["bf"]
    A = we.shape[0]

    def _round_up(x, m):
        return ((x + m - 1) // m) * m

    # ---- host-side one-time prep --------------------------------------------
    A_pad = _round_up(A, 128)
    # Pad P to the sublane packing of the compute dtype so the in-kernel
    # flatten reshape is layout-free.  (Masked in-kernel before the softmax.)
    sub = 16 if jnp.dtype(compute_dtype).itemsize < 4 else 8
    P_pad = _round_up(P, sub)

    we_t = jnp.pad(we.T, ((0, 0), (0, A_pad - A))).astype(compute_dtype)   # (E, A_pad)
    wd_t = jnp.pad(wd.T, ((0, 0), (0, A_pad - A))).astype(compute_dtype)   # (D, A_pad)
    wf_row = jnp.pad(wf, ((0, 0), (0, A_pad - A))).astype(jnp.float32)     # (1, A_pad)
    bias = jnp.pad((be + bd)[None, :], ((0, 0), (0, A_pad - A))).astype(jnp.float32)
    bf_s = bf.astype(jnp.float32).reshape(1)                               # SMEM scalar

    enc = jnp.pad(encoder_out,
                  ((0, 0), (0, P_pad - P), (0, 0))).astype(compute_dtype)
    dec = decoder_hidden.astype(compute_dtype)

    # ---- generation-aware VMEM budget / batch tile ---------------------------
    try:
        vmem_cap = int(pltpu.get_tpu_info().vmem_capacity_bytes)
    except Exception:
        vmem_cap = 64 * 1024 * 1024                 # v7x per-TC; most conservative
    if vmem_limit_bytes is None:
        vmem_limit_bytes = int(vmem_cap * 0.85)     # leave compiler headroom

    ic = jnp.dtype(compute_dtype).itemsize
    if batch_tile is None:
        # Bytes that scale with the batch tile: double-buffered enc/dec/out
        # blocks plus the dominant f32 intermediates (att1+h, enc*alpha).
        per_row = (2 * P_pad * E * ic + 2 * D * ic + 2 * (E + P_pad) * 4
                   + 2 * P_pad * A_pad * 4 + P_pad * E * 4)
        fixed = 2 * ((E + D) * A_pad * ic + 2 * A_pad * 4)   # constant operands
        budget = max(int(vmem_limit_bytes * 0.75) - fixed, per_row)
        tb_max = max(1, budget // per_row)
        if B <= tb_max:
            # give the grid >= 2 steps when the batch allows it so v7x's
            # second TensorCore gets work under "parallel" semantics
            batch_tile = _round_up((B + 1) // 2, 8) if B >= 16 else B
        else:
            batch_tile = min(B, max(8, (tb_max // 8) * 8))
    tb = int(batch_tile)
    if tb != B and tb % 8 != 0:                     # sublane-legal block shape
        tb = min(B, max(8, _round_up(tb, 8)))
    grid = (pl.cdiv(B, tb),)

    # TODO(synk): for very large P*A_pad on v7x, additionally chunk over P
    # inside the kernel to bound the f32 intermediate instead of shrinking tb.

    awe, alpha_pad = pl.pallas_call(
        functools.partial(_attention_kernel, valid_pixels=P),
        out_shape=(
            jax.ShapeDtypeStruct((B, E), jnp.float32),      # weighted encoding
            jax.ShapeDtypeStruct((B, P_pad), jnp.float32),  # alpha (padded)
        ),
        grid=grid,
        in_specs=[
            pl.BlockSpec((tb, P_pad, E), lambda b: (b, 0, 0)),   # encoder_out
            pl.BlockSpec((tb, D), lambda b: (b, 0)),             # decoder_hidden
            pl.BlockSpec((E, A_pad), lambda b: (0, 0)),          # We^T
            pl.BlockSpec((D, A_pad), lambda b: (0, 0)),          # Wd^T
            pl.BlockSpec((1, A_pad), lambda b: (0, 0)),          # wf row
            pl.BlockSpec((1, A_pad), lambda b: (0, 0)),          # be + bd
            pl.BlockSpec(memory_space=pltpu.MemorySpace.SMEM),   # bf scalar
        ],
        out_specs=(
            pl.BlockSpec((tb, E), lambda b: (b, 0)),
            pl.BlockSpec((tb, P_pad), lambda b: (b, 0)),
        ),
        compiler_params=pltpu.CompilerParams(
            dimension_semantics=("parallel",),
            vmem_limit_bytes=int(vmem_limit_bytes),
        ),
    )(enc, dec, we_t, wd_t, wf_row, bias, bf_s)
    return awe, alpha_pad[:, :P]


def init_params(key, encoder_dim, decoder_dim, attention_dim):
    k1, k2, k3, k4, k5, k6 = jax.random.split(key, 6)
    scale = 0.1
    return {
        "we": scale * jax.random.normal(k1, (attention_dim, encoder_dim), jnp.float32),
        "be": scale * jax.random.normal(k2, (attention_dim,), jnp.float32),
        "wd": scale * jax.random.normal(k3, (attention_dim, decoder_dim), jnp.float32),
        "bd": scale * jax.random.normal(k4, (attention_dim,), jnp.float32),
        "wf": scale * jax.random.normal(k5, (1, attention_dim), jnp.float32),
        "bf": scale * jax.random.normal(k6, (1,), jnp.float32),
    }


def reference_forward(encoder_out, decoder_hidden, p):
    att1 = encoder_out @ p["we"].T + p["be"]                    # (B, P, A)
    att2 = decoder_hidden @ p["wd"].T + p["bd"]                 # (B, A)
    h = jnp.maximum(att1 + att2[:, None, :], 0.0)
    att = (h @ p["wf"].T)[..., 0] + p["bf"][0]                  # (B, P)
    alpha = jax.nn.softmax(att, axis=1)
    awe = jnp.sum(encoder_out * alpha[:, :, None], axis=1)      # (B, E)
    return awe, alpha


if __name__ == "__main__":
    B, P = 2, 8            # batch, num_pixels
    E, D, A = 32, 32, 32   # encoder_dim, decoder_dim, attention_dim

    key = jax.random.PRNGKey(0)
    kx, kh, kp = jax.random.split(key, 3)
    encoder_out = jax.random.normal(kx, (B, P, E), jnp.float32)
    decoder_hidden = jax.random.normal(kh, (B, D), jnp.float32)
    params = init_params(kp, E, D, A)

    awe_ref, alpha_ref = reference_forward(encoder_out, decoder_hidden, params)

    # Pure-f32 path: tight check (approx reciprocal adds ~1e-4 relative error).
    awe32, alpha32 = attention_forward(encoder_out, decoder_hidden, params,
                                       compute_dtype=jnp.float32)
    jax.block_until_ready((awe32, alpha32))
    assert awe32.shape == (B, E) and alpha32.shape == (B, P)
    assert jnp.allclose(alpha32, alpha_ref, atol=2e-3, rtol=2e-3)
    assert jnp.allclose(awe32, awe_ref, atol=2e-3, rtol=2e-3)

    # Default mixed precision (bf16 MXU inputs, f32 accumulate / softmax);
    # exercises the P-padding + masking path (P_pad = 16 > P = 8).
    awe16, alpha16 = attention_forward(encoder_out, decoder_hidden, params)
    jax.block_until_ready((awe16, alpha16))
    assert awe16.shape == (B, E) and alpha16.shape == (B, P)
    assert jnp.allclose(alpha16, alpha_ref, atol=5e-2, rtol=5e-2)
    assert jnp.allclose(awe16, awe_ref, atol=5e-2, rtol=5e-2)

    print("KERNEL_OK")
</pallas_src>

<mosaic_0001>
module attributes {stable_mosaic.version = 11 : i64} {
  func.func @_attention_kernel(%arg0: i32, %arg1: memref<2x8x32xf32, #tpu.memory_space<vmem>>, %arg2: memref<2x32xf32, #tpu.memory_space<vmem>>, %arg3: memref<32x128xf32, #tpu.memory_space<vmem>>, %arg4: memref<32x128xf32, #tpu.memory_space<vmem>>, %arg5: memref<1x128xf32, #tpu.memory_space<vmem>>, %arg6: memref<1x128xf32, #tpu.memory_space<vmem>>, %arg7: memref<1xf32, #tpu.memory_space<smem>>, %arg8: memref<2x32xf32, #tpu.memory_space<vmem>>, %arg9: memref<2x8xf32, #tpu.memory_space<vmem>>) attributes {dimension_semantics = [#tpu.dimension_semantics<parallel>], iteration_bounds = array<i64: 1>, scalar_prefetch = 0 : i64, scratch_operands = 0 : i64, tpu.core_type = #tpu.core_type<tc>, window_params = [{transform_indices = @transform_0, window_bounds = array<i64: 2, 8, 32>}, {transform_indices = @transform_1, window_bounds = array<i64: 2, 32>}, {pipeline_mode = #tpu.pipeline_mode<synchronous>, transform_indices = @transform_2, window_bounds = array<i64: 32, 128>}, {pipeline_mode = #tpu.pipeline_mode<synchronous>, transform_indices = @transform_3, window_bounds = array<i64: 32, 128>}, {pipeline_mode = #tpu.pipeline_mode<synchronous>, transform_indices = @transform_4, window_bounds = array<i64: 1, 128>}, {pipeline_mode = #tpu.pipeline_mode<synchronous>, transform_indices = @transform_5, window_bounds = array<i64: 1, 128>}, {transform_indices = @transform_6, window_bounds = array<i64: 1>}, {transform_indices = @transform_7, window_bounds = array<i64: 2, 32>}, {transform_indices = @transform_8, window_bounds = array<i64: 2, 8>}]} {
    %c0 = arith.constant 0 : index
    %c0_0 = arith.constant 0 : index
    %c0_1 = arith.constant 0 : index
    %0 = vector.load %arg1[%c0, %c0_0, %c0_1] : memref<2x8x32xf32, #tpu.memory_space<vmem>>, vector<2x8x32xf32>
    %c0_2 = arith.constant 0 : index
    %c0_3 = arith.constant 0 : index
    %1 = vector.load %arg2[%c0_2, %c0_3] : memref<2x32xf32, #tpu.memory_space<vmem>>, vector<2x32xf32>
    %2 = vector.shape_cast %0 : vector<2x8x32xf32> to vector<16x32xf32>
    %c0_4 = arith.constant 0 : index
    %c0_5 = arith.constant 0 : index
    %3 = vector.load %arg3[%c0_4, %c0_5] : memref<32x128xf32, #tpu.memory_space<vmem>>, vector<32x128xf32>
    %cst = arith.constant dense<0.000000e+00> : vector<16x128xf32>
    %4 = tpu.matmul %2, %3, %cst {dimension_numbers = #tpu.dot_dimension_numbers<[1], [0], [0], [1], [0, 0, 1, 1], [], []>} : vector<16x32xf32>, vector<32x128xf32>, vector<16x128xf32> -> vector<16x128xf32>
    %5 = vector.shape_cast %4 : vector<16x128xf32> to vector<2x8x128xf32>
    %c0_6 = arith.constant 0 : index
    %c0_7 = arith.constant 0 : index
    %6 = vector.load %arg4[%c0_6, %c0_7] : memref<32x128xf32, #tpu.memory_space<vmem>>, vector<32x128xf32>
    %cst_8 = arith.constant dense<0.000000e+00> : vector<2x128xf32>
    %7 = tpu.matmul %1, %6, %cst_8 {dimension_numbers = #tpu.dot_dimension_numbers<[1], [0], [0], [1], [0, 0, 1, 1], [], []>} : vector<2x32xf32>, vector<32x128xf32>, vector<2x128xf32> -> vector<2x128xf32>
    %8 = vector.shape_cast %7 : vector<2x128xf32> to vector<2x1x128xf32>
    %9 = vector.broadcast %8 : vector<2x1x128xf32> to vector<2x8x128xf32>
    %10 = arith.addf %5, %9 : vector<2x8x128xf32>
    %c0_9 = arith.constant 0 : index
    %c0_10 = arith.constant 0 : index
    %11 = vector.load %arg6[%c0_9, %c0_10] : memref<1x128xf32, #tpu.memory_space<vmem>>, vector<1x128xf32>
    %12 = vector.shape_cast %11 : vector<1x128xf32> to vector<1x1x128xf32>
    %13 = vector.broadcast %12 : vector<1x1x128xf32> to vector<2x8x128xf32>
    %14 = arith.addf %10, %13 : vector<2x8x128xf32>
    %cst_11 = arith.constant 0.000000e+00 : f32
    %15 = vector.broadcast %cst_11 : f32 to vector<2x8x128xf32>
    %16 = arith.maximumf %14, %15 : vector<2x8x128xf32>
    %c0_12 = arith.constant 0 : index
    %c0_13 = arith.constant 0 : index
    %17 = vector.load %arg5[%c0_12, %c0_13] : memref<1x128xf32, #tpu.memory_space<vmem>>, vector<1x128xf32>
    %18 = vector.shape_cast %17 : vector<1x128xf32> to vector<1x1x128xf32>
    %19 = vector.broadcast %18 : vector<1x1x128xf32> to vector<2x8x128xf32>
    %20 = arith.mulf %16, %19 : vector<2x8x128xf32>
    %cst_14 = arith.constant dense<0.000000e+00> : vector<2x8xf32>
    %21 = vector.multi_reduction <add>, %20, %cst_14 [2] : vector<2x8x128xf32> to vector<2x8xf32>
    %c0_15 = arith.constant 0 : index
    %22 = memref.load %arg7[%c0_15] : memref<1xf32, #tpu.memory_space<smem>>
    %23 = vector.broadcast %22 : f32 to vector<2x8xf32>
    %24 = arith.addf %21, %23 : vector<2x8xf32>
    %cst_16 = arith.constant dense<0xFF800000> : vector<2xf32>
    %25 = vector.multi_reduction <maximumf>, %24, %cst_16 [1] : vector<2x8xf32> to vector<2xf32>
    %26 = vector.shape_cast %25 : vector<2xf32> to vector<2x1xf32>
    %27 = vector.broadcast %26 : vector<2x1xf32> to vector<2x8xf32>
    %28 = arith.subf %24, %27 : vector<2x8xf32>
    %29 = math.exp %28 : vector<2x8xf32>
    %cst_17 = arith.constant dense<0.000000e+00> : vector<2xf32>
    %30 = vector.multi_reduction <add>, %29, %cst_17 [1] : vector<2x8xf32> to vector<2xf32>
    %31 = vector.shape_cast %30 : vector<2xf32> to vector<2x1xf32>
    %32 = tpu.reciprocal %31 {approx = true} : vector<2x1xf32> -> vector<2x1xf32>
    %33 = vector.broadcast %32 : vector<2x1xf32> to vector<2x8xf32>
    %34 = arith.mulf %29, %33 : vector<2x8xf32>
    %35 = vector.shape_cast %34 : vector<2x8xf32> to vector<2x8x1xf32>
    %36 = vector.broadcast %35 : vector<2x8x1xf32> to vector<2x8x32xf32>
    %37 = arith.mulf %0, %36 : vector<2x8x32xf32>
    %cst_18 = arith.constant dense<0.000000e+00> : vector<2x32xf32>
    %38 = vector.multi_reduction <add>, %37, %cst_18 [1] : vector<2x8x32xf32> to vector<2x32xf32>
    %c0_19 = arith.constant 0 : index
    %c0_20 = arith.constant 0 : index
    %39 = vector.load %arg8[%c0_19, %c0_20] : memref<2x32xf32, #tpu.memory_space<vmem>>, vector<2x32xf32>
    tpu.vector_store %arg8[%c0_19, %c0_20], %38 {strides = array<i32>} : memref<2x32xf32, #tpu.memory_space<vmem>>, vector<2x32xf32>,
    %c0_21 = arith.constant 0 : index
    %c0_22 = arith.constant 0 : index
    %40 = vector.load %arg9[%c0_21, %c0_22] : memref<2x8xf32, #tpu.memory_space<vmem>>, vector<2x8xf32>
    tpu.vector_store %arg9[%c0_21, %c0_22], %34 {strides = array<i32>} : memref<2x8xf32, #tpu.memory_space<vmem>>, vector<2x8xf32>,
    return
  }
  func.func @transform_0(%arg0: i32) -> (i32, i32, i32) {
    %c0_i32 = arith.constant 0 : i32
    %c0_i32_0 = arith.constant 0 : i32
    %c0_i32_1 = arith.constant 0 : i32
    return %arg0, %c0_i32, %c0_i32_0 : i32, i32, i32
  }
  func.func @transform_1(%arg0: i32) -> (i32, i32) {
    %c0_i32 = arith.constant 0 : i32
    %c0_i32_0 = arith.constant 0 : i32
    return %arg0, %c0_i32 : i32, i32
  }
  func.func @transform_2(%arg0: i32) -> (i32, i32) {
    %c0_i32 = arith.constant 0 : i32
    %c0_i32_0 = arith.constant 0 : i32
    %c0_i32_1 = arith.constant 0 : i32
    return %c0_i32, %c0_i32_0 : i32, i32
  }
  func.func @transform_3(%arg0: i32) -> (i32, i32) {
    %c0_i32 = arith.constant 0 : i32
    %c0_i32_0 = arith.constant 0 : i32
    %c0_i32_1 = arith.constant 0 : i32
    return %c0_i32, %c0_i32_0 : i32, i32
  }
  func.func @transform_4(%arg0: i32) -> (i32, i32) {
    %c0_i32 = arith.constant 0 : i32
    %c0_i32_0 = arith.constant 0 : i32
    %c0_i32_1 = arith.constant 0 : i32
    return %c0_i32, %c0_i32_0 : i32, i32
  }
  func.func @transform_5(%arg0: i32) -> (i32, i32) {
    %c0_i32 = arith.constant 0 : i32
    %c0_i32_0 = arith.constant 0 : i32
    %c0_i32_1 = arith.constant 0 : i32
    return %c0_i32, %c0_i32_0 : i32, i32
  }
  func.func @transform_6(%arg0: i32) -> i32 {
    %c0_i32 = arith.constant 0 : i32
    %c0_i32_0 = arith.constant 0 : i32
    return %c0_i32 : i32
  }
  func.func @transform_7(%arg0: i32) -> (i32, i32) {
    %c0_i32 = arith.constant 0 : i32
    %c0_i32_0 = arith.constant 0 : i32
    return %arg0, %c0_i32 : i32, i32
  }
  func.func @transform_8(%arg0: i32) -> (i32, i32) {
    %c0_i32 = arith.constant 0 : i32
    %c0_i32_0 = arith.constant 0 : i32
    return %arg0, %c0_i32 : i32, i32
  }
}

</mosaic_0001>

<llo_original>
// kernel: tpu_custom_call.1
$region0: #{tpu_custom_call.1}
  #allocation0 [shape = 'u32[]', space=smem, size = 0x4, offset = 0x4, fixed_abs, tag = 'smem constant byte address 0x4 - core index']
  #allocation1 [shape = 'u32[144,128]{1,0:T(1,128)}', space=vmem, size = 0x12000, scoped, tag = 'internal scratch']
  #allocation2 [shape = 'f32[1]{0:T(128)S(6)}', space=smem, size = 0x200, scoped, tag = 'scoped memory for tpu_custom_call.1']
  %s0 = inlined_call_operand.hbm [shape: f32[2,8,32], index: 0, kind: input, shape index: {}]
  %s1 = inlined_call_operand.vmem [shape: f32[2,32], index: 1, kind: input, shape index: {}]
  %s2 = inlined_call_operand.hbm [shape: f32[32,128], index: 2, kind: input, shape index: {}]
  %s3 = inlined_call_operand.hbm [shape: f32[32,128], index: 3, kind: input, shape index: {}]
  %s4 = inlined_call_operand.vmem [shape: f32[1,128], index: 4, kind: input, shape index: {}]
  %s5 = inlined_call_operand.vmem [shape: f32[1,128], index: 5, kind: input, shape index: {}]
  %s6 = inlined_call_operand.<no memory space> [shape: f32[1], index: 6, kind: input, shape index: {}]
  %s7 = inlined_call_operand.hbm [shape: f32[2,32], index: 7, kind: output, shape index: {0}]
  %s8 = inlined_call_operand.hbm [shape: f32[2,8], index: 8, kind: output, shape index: {1}]
  %9 = xla_tuple %s7, %s8
  %s10 = sld [smem:[#allocation0]]
  $region58: #{tpu_custom_call.1} parent=0
    _
  %s12 = ssub.s32 1, %s10
  %s13 = scalar_select 0, %s12, %s10
  %14 = sst [smem:[#allocation2]] %s6
  $region1: #{tpu_custom_call.1} parent=0
    #allocation3 [shape = 'u8[8192]{0}', space=vmem, size = 0x2000, scoped, tag = 'input window, operand 0, single buffered']
    #allocation4 [shape = 's32[1]{0}', space=sflag, size = 0x4, scoped, tag = 'scoped memory for tpu_custom_call.1']
    #allocation5 [shape = 's32[1]{0}', space=sflag, size = 0x4, scoped, tag = 'scoped memory for tpu_custom_call.1']
    #allocation6 [shape = 'u8[16384]{0}', space=vmem, size = 0x4000, scoped, tag = 'input window, operand 2, single buffered']
    #allocation7 [shape = 's32[1]{0}', space=sflag, size = 0x4, scoped, tag = 'scoped memory for tpu_custom_call.1']
    #allocation8 [shape = 'u8[16384]{0}', space=vmem, size = 0x4000, scoped, tag = 'input window, operand 3, single buffered']
    #allocation9 [shape = 'u8[1024]{0}', space=vmem, size = 0x400, scoped, tag = 'output window, operand 0, single buffered']
    #allocation10 [shape = 'u8[1024]{0}', space=vmem, size = 0x400, scoped, tag = 'output window, operand 1, single buffered']
    #allocation11 [shape = 's32[1]{0}', space=sflag, size = 0x4, scoped, tag = 'scoped memory for tpu_custom_call.1']
    %15 = vsyncpa [#allocation4], 0
    %16 = vsyncpa [#allocation7], 0
    %17 = vsyncpa [#allocation5], 0
    %18 = vsyncpa [#allocation11], 0
    // Predicated region
    $region2: #{tpu_custom_call.1} parent=1 // pred_check
      _
    $region3: #{tpu_custom_call.1} parent=1 // pred_check_branch
      %20 = sbr.rel (0) target = $region5
    $region4: #{tpu_custom_call.1} parent=1 // pred_region
      %s22 = ssub.s32 256, 256
      %23 = vsyncadd [#allocation4], %s22
      %s24 = sshll.u32 [#allocation3], 4
      %s25 = int_to_ptr.vmem [resolvable:$true] %s24
      %30 = dma.hbm_to_vmem [thread:$0]  %s0, 256, %s25, [#allocation4], 128, 128, 8
    $region5: #{tpu_custom_call.1} parent=1 // pred_fallthru
      _
    // Predicated region
    $region6: #{tpu_custom_call.1} parent=1 // pred_check
      _
    $region7: #{tpu_custom_call.1} parent=1 // pred_check_branch
      %32 = sbr.rel (0) target = $region9
    $region8: #{tpu_custom_call.1} parent=1 // pred_region
      _
    $region9: #{tpu_custom_call.1} parent=1 // pred_fallthru
      _
    // Predicated region
    $region10: #{tpu_custom_call.1} parent=1 // pred_check
      _
    $region11: #{tpu_custom_call.1} parent=1 // pred_check_branch
      %34 = sbr.rel (0) target = $region13
    $region12: #{tpu_custom_call.1} parent=1 // pred_region
      %s36 = ssub.s32 512, 512
      %37 = vsyncadd [#allocation7], %s36
      %s38 = sshll.u32 [#allocation6], 4
      %s39 = int_to_ptr.vmem [resolvable:$true] %s38
      %44 = dma.hbm_to_vmem [thread:$0]  %s2, 512, %s39, [#allocation7], 128, 128, 8
    $region13: #{tpu_custom_call.1} parent=1 // pred_fallthru
      _
    // Predicated region
    $region14: #{tpu_custom_call.1} parent=1 // pred_check
      _
    $region15: #{tpu_custom_call.1} parent=1 // pred_check_branch
      %46 = sbr.rel (0) target = $region17
    $region16: #{tpu_custom_call.1} parent=1 // pred_region
      %s48 = ssub.s32 512, 512
      %49 = vsyncadd [#allocation7], %s48
      %s50 = sshll.u32 [#allocation8], 4
      %s51 = int_to_ptr.vmem [resolvable:$true] %s50
      %56 = dma.hbm_to_vmem [thread:$0]  %s3, 512, %s51, [#allocation7], 128, 128, 8
    $region17: #{tpu_custom_call.1} parent=1 // pred_fallthru
      _
    // Predicated region
    $region18: #{tpu_custom_call.1} parent=1 // pred_check
      _
    $region19: #{tpu_custom_call.1} parent=1 // pred_check_branch
      %58 = sbr.rel (0) target = $region21
    $region20: #{tpu_custom_call.1} parent=1 // pred_region
      _
    $region21: #{tpu_custom_call.1} parent=1 // pred_fallthru
      _
    // Predicated region
    $region22: #{tpu_custom_call.1} parent=1 // pred_check
      _
    $region23: #{tpu_custom_call.1} parent=1 // pred_check_branch
      %60 = sbr.rel (0) target = $region25
    $region24: #{tpu_custom_call.1} parent=1 // pred_region
      _
    $region25: #{tpu_custom_call.1} parent=1 // pred_fallthru
      _
    // Predicated region
    $region26: #{tpu_custom_call.1} parent=1 // pred_check
      _
    $region27: #{tpu_custom_call.1} parent=1 // pred_check_branch
      %62 = sbr.rel (0) target = $region29
    $region28: #{tpu_custom_call.1} parent=1 // pred_region
      _
    $region29: #{tpu_custom_call.1} parent=1 // pred_fallthru
      _
    // Predicated region
    $region30: #{tpu_custom_call.1} parent=1 // pred_check
      _
    $region31: #{tpu_custom_call.1} parent=1 // pred_check_branch
      %64 = sbr.rel (0) target = $region33
    $region32: #{tpu_custom_call.1} parent=1 // pred_region
      %65 = dma.done [#allocation4], 256
    $region33: #{tpu_custom_call.1} parent=1 // pred_fallthru
      _
    // Predicated region
    $region34: #{tpu_custom_call.1} parent=1 // pred_check
      _
    $region35: #{tpu_custom_call.1} parent=1 // pred_check_branch
      %67 = sbr.rel (0) target = $region37
    $region36: #{tpu_custom_call.1} parent=1 // pred_region
      %68 = dma.done [#allocation7], 512
    $region37: #{tpu_custom_call.1} parent=1 // pred_fallthru
      _
    // Predicated region
    $region38: #{tpu_custom_call.1} parent=1 // pred_check
      _
    $region39: #{tpu_custom_call.1} parent=1 // pred_check_branch
      %70 = sbr.rel (0) target = $region41
    $region40: #{tpu_custom_call.1} parent=1 // pred_region
      %71 = dma.done [#allocation7], 512
    $region41: #{tpu_custom_call.1} parent=1 // pred_fallthru
      _
    %v72 = vld [vmem:[#allocation3] sm:$0xff]
    %v73 = vld [vmem:[#allocation3 + $0x8] sm:$0xff]
    %v74 = vld [vmem:[%s1] sm:$0x3]
    %v75 = vld [vmem:[#allocation6] sm:$0xff]
    %v76 = vld [vmem:[#allocation6 + $0x8] sm:$0xff]
    %v77 = vld [vmem:[#allocation6 + $0x10] sm:$0xff]
    %v78 = vld [vmem:[#allocation6 + $0x18] sm:$0xff]
    %vm79 = vcmask 261120
    %v81 = vsel %vm79, %v72, 0
    %v84 = vsel %vm79, %v73, 0
    %86 = vmatprep.subr.mxu0 0.0
    %87 = vmatpush1.msra.mxu0 0.0
    %88 = vmatprep.subr.mxu0 0.0
    %89 = vmatpush1.msra.mxu0 0.0
    %90 = vmatprep.subr.mxu0 0.0
    %91 = vmatpush1.msra.mxu0 0.0
    %92 = vmatprep.subr.mxu0 0.0
    %93 = vmatpush1.msra.mxu0 0.0
    %94 = vmatprep.subr.mxu0 0.0
    %95 = vmatpush1.msra.mxu0 0.0
    %96 = vmatprep.subr.mxu0 0.0
    %97 = vmatpush1.msra.mxu0 0.0
    %98 = vmatprep.subr.mxu0 0.0
    %99 = vmatpush1.msra.mxu0 0.0
    %100 = vmatprep.subr.mxu0 0.0
    %101 = vmatpush1.msra.mxu0 0.0
    %102 = vmatprep.subr.mxu0 0.0
    %103 = vmatpush1.msra.mxu0 0.0
    %104 = vmatprep.subr.mxu0 0.0
    %105 = vmatpush1.msra.mxu0 0.0
    %106 = vmatprep.subr.mxu0 0.0
    %107 = vmatpush1.msra.mxu0 0.0
    %108 = vmatprep.subr.mxu0 0.0
    %109 = vmatpush1.msra.mxu0 0.0
    %110 = vmatprep.subr.mxu0 0.0
    %111 = vmatpush1.msra.mxu0 %v78
    %112 = vmatprep.subr.mxu0 0.0
    %113 = vmatpush1.msra.mxu0 %v77
    %114 = vmatprep.subr.mxu0 0.0
    %115 = vmatpush1.msra.mxu0 %v76
    %116 = vmatprep.subr.mxu0 0.0
    %117 = vmatpush1.msra.mxu0 %v75
    %118 = vmatprep.subr.mxu0 0.0
    %119 = vmatpush2.msra.mxu0 0.0
    %120 = vmatprep.subr.mxu0 0.0
    %121 = vmatpush2.msra.mxu0 0.0
    %122 = vmatprep.subr.mxu0 0.0
    %123 = vmatpush2.msra.mxu0 0.0
    %124 = vmatprep.subr.mxu0 0.0
    %125 = vmatpush2.msra.mxu0 0.0
    %126 = vmatprep.subr.mxu0 0.0
    %127 = vmatpush2.msra.mxu0 0.0
    %128 = vmatprep.subr.mxu0 0.0
    %129 = vmatpush2.msra.mxu0 0.0
    %130 = vmatprep.subr.mxu0 0.0
    %131 = vmatpush2.msra.mxu0 0.0
    %132 = vmatprep.subr.mxu0 0.0
    %133 = vmatpush2.msra.mxu0 0.0
    %134 = vmatprep.subr.mxu0 0.0
    %135 = vmatpush2.msra.mxu0 0.0
    %136 = vmatprep.subr.mxu0 0.0
    %137 = vmatpush2.msra.mxu0 0.0
    %138 = vmatprep.subr.mxu0 0.0
    %139 = vmatpush2.msra.mxu0 0.0
    %140 = vmatprep.subr.mxu0 0.0
    %141 = vmatpush2.msra.mxu0 0.0
    %142 = vmatprep.subr.mxu0 0.0
    %143 = vmatpush2.msra.mxu0 0.0
    %144 = vmatprep.subr.mxu0 0.0
    %145 = vmatpush2.msra.mxu0 0.0
    %146 = vmatprep.subr.mxu0 0.0
    %147 = vmatpush2.msra.mxu0 0.0
    %148 = vmatprep.subr.mxu0 0.0
    %149 = vmatpush2.msra.mxu0 0.0
    %150 = vmatprep.mubr.f32.mxu0 0.0
    %151 = vmatmul.mubr.f32.gmra.mxu0 %v81
    %v152 = vpop.f32.mrf.mxu0
    %v153 = vadd.f32 0.0, %v152
    %v154 = vpop.f32.mrf.mxu0
    %155 = vmatprep.mubr.f32.mxu0 0.0
    %156 = vmatmul.mubr.f32.gmra.mxu0 %v84
    %v157 = vpop.f32.mrf.mxu0
    %v158 = vadd.f32 0.0, %v157
    %v159 = vpop.f32.mrf.mxu0
    %160 = vdwg.mxu0
    %v161 = vld [vmem:[#allocation8] sm:$0xff]
    %v162 = vld [vmem:[#allocation8 + $0x8] sm:$0xff]
    %v163 = vld [vmem:[#allocation8 + $0x10] sm:$0xff]
    %v164 = vld [vmem:[#allocation8 + $0x18] sm:$0xff]
    %v166 = vsel %vm79, %v74, 0
    %168 = vmatprep.subr.mxu0 0.0
    %169 = vmatpush1.msra.mxu0 0.0
    %170 = vmatprep.subr.mxu0 0.0
    %171 = vmatpush1.msra.mxu0 0.0
    %172 = vmatprep.subr.mxu0 0.0
    %173 = vmatpush1.msra.mxu0 0.0
    %174 = vmatprep.subr.mxu0 0.0
    %175 = vmatpush1.msra.mxu0 0.0
    %176 = vmatprep.subr.mxu0 0.0
    %177 = vmatpush1.msra.mxu0 0.0
    %178 = vmatprep.subr.mxu0 0.0
    %179 = vmatpush1.msra.mxu0 0.0
    %180 = vmatprep.subr.mxu0 0.0
    %181 = vmatpush1.msra.mxu0 0.0
    %182 = vmatprep.subr.mxu0 0.0
    %183 = vmatpush1.msra.mxu0 0.0
    %184 = vmatprep.subr.mxu0 0.0
    %185 = vmatpush1.msra.mxu0 0.0
    %186 = vmatprep.subr.mxu0 0.0
    %187 = vmatpush1.msra.mxu0 0.0
    %188 = vmatprep.subr.mxu0 0.0
    %189 = vmatpush1.msra.mxu0 0.0
    %190 = vmatprep.subr.mxu0 0.0
    %191 = vmatpush1.msra.mxu0 0.0
    %192 = vmatprep.subr.mxu0 0.0
    %193 = vmatpush1.msra.mxu0 %v164
    %194 = vmatprep.subr.mxu0 0.0
    %195 = vmatpush1.msra.mxu0 %v163
    %196 = vmatprep.subr.mxu0 0.0
    %197 = vmatpush1.msra.mxu0 %v162
    %198 = vmatprep.subr.mxu0 0.0
    %199 = vmatpush1.msra.mxu0 %v161
    %200 = vmatprep.subr.mxu0 0.0
    %201 = vmatpush2.msra.mxu0 0.0
    %202 = vmatprep.subr.mxu0 0.0
    %203 = vmatpush2.msra.mxu0 0.0
    %204 = vmatprep.subr.mxu0 0.0
    %205 = vmatpush2.msra.mxu0 0.0
    %206 = vmatprep.subr.mxu0 0.0
    %207 = vmatpush2.msra.mxu0 0.0
    %208 = vmatprep.subr.mxu0 0.0
    %209 = vmatpush2.msra.mxu0 0.0
    %210 = vmatprep.subr.mxu0 0.0
    %211 = vmatpush2.msra.mxu0 0.0
    %212 = vmatprep.subr.mxu0 0.0
    %213 = vmatpush2.msra.mxu0 0.0
    %214 = vmatprep.subr.mxu0 0.0
    %215 = vmatpush2.msra.mxu0 0.0
    %216 = vmatprep.subr.mxu0 0.0
    %217 = vmatpush2.msra.mxu0 0.0
    %218 = vmatprep.subr.mxu0 0.0
    %219 = vmatpush2.msra.mxu0 0.0
    %220 = vmatprep.subr.mxu0 0.0
    %221 = vmatpush2.msra.mxu0 0.0
    %222 = vmatprep.subr.mxu0 0.0
    %223 = vmatpush2.msra.mxu0 0.0
    %224 = vmatprep.subr.mxu0 0.0
    %225 = vmatpush2.msra.mxu0 0.0
    %226 = vmatprep.subr.mxu0 0.0
    %227 = vmatpush2.msra.mxu0 0.0
    %228 = vmatprep.subr.mxu0 0.0
    %229 = vmatpush2.msra.mxu0 0.0
    %230 = vmatprep.subr.mxu0 0.0
    %231 = vmatpush2.msra.mxu0 0.0
    %232 = vmatprep.mubr.f32.mxu0 0.0
    %233 = vmatmul.mubr.f32.gmra.mxu0 %v166
    %v234 = vpop.f32.mrf.mxu0
    %v235 = vadd.f32 0.0, %v234
    %v236 = vpop.f32.mrf.mxu0
    %237 = vdwg.mxu0
    %v240 = vunpack.c.l.s4 1966171168
    %v241 = vunpack.c.0.s8 %v240
    %v242 = vlaneseq
    %v243 = vshrl.u32 %v242, 7
    %v244 = vsub.s32 %v241, %v243
    %v245 = vrot.slane %v235, %v244
    %v246 = vcombine.high %v245, %v245
    %v248 = vunpack.c.l.s4 1966171168
    %v249 = vunpack.c.0.s8 %v248
    %v250 = vlaneseq
    %v251 = vshrl.u32 %v250, 7
    %v252 = vsub.s32 %v249, %v251
    %v253 = vrot.slane %v245, %v252
    %v255 = vunpack.c.l.s4 1966171168
    %v256 = vunpack.c.0.s8 %v255
    %v257 = vlaneseq
    %v258 = vshrl.u32 %v257, 7
    %v259 = vsub.s32 %v256, %v258
    %v260 = vrot.slane %v246, %v259
    %v261 = vlaneseq
    %v262 = vshrl.u32 %v261, 7
    %v263 = vsub.s32 0, %v262
    %v264 = vrot.slane %v253, %v263
    %v265 = vlaneseq
    %v266 = vshrl.u32 %v265, 7
    %v267 = vsub.s32 0, %v266
    %v268 = vrot.slane %v260, %v267
    %v271 = vadd.f32 %v153, %v264
    %v272 = vadd.f32 %v158, %v268
    %v273 = vld [vmem:[%s5] sm:$0x1]
    %v275 = vlaneseq
    %v276 = vshrl.u32 %v275, 7
    %v277 = vsub.s32 0, %v276
    %v278 = vrot.slane %v273, %v277
    %v280 = vadd.f32 %v271, %v278
    %v281 = vadd.f32 %v272, %v278
    %v282 = vmax.f32 %v280, 0.0
    %v283 = vmax.f32 %v281, 0.0
    %v284 = vld [vmem:[%s4] sm:$0x1]
    %v286 = vlaneseq
    %v287 = vshrl.u32 %v286, 7
    %v288 = vsub.s32 0, %v287
    %v289 = vrot.slane %v284, %v288
    %v291 = vmul.f32 %v282, %v289
    %v292 = vmul.f32 %v283, %v289
    %293 = vadd.xlane.f32.xlu0 %v291
    %v294 = vpop.xlane.xlu0 %293
    %295 = vadd.xlane.f32.xlu0 %v292
    %v296 = vpop.xlane.xlu0 %295
    %s297 = sld [smem:[#allocation2]]
    %v298 = vstv %s297
    %v299 = vadd.f32 %v294, %v298
    %v300 = vadd.f32 %v296, %v298
    %v303 = vlaneseq
    %v304 = vand.u32 %v303, 127
    %v305 = vlaneseq
    %v306 = vshrl.u32 %v305, 7
    %v307 = vsub.s32 %v304, %v306
    %v308 = vrot.slane %v299, %v307
    %v309 = vlaneseq
    %v310 = vshrl.u32 %v309, 7
    %v311 = vsub.s32 %v304, %v310
    %v312 = vrot.slane %v300, %v311
    %vm313 = vcmask 1041409
    %v314 = vsel %vm313, %v312, %v308
    %vm316 = vcmask 58368
    %v317 = vsel %vm316, %v314, -inf
    %318 = vmax.xlane.f32.xlu0 %v317
    %v319 = vpop.xlane.xlu0 %318
    %v321 = vlaneseq
    %v322 = vshrl.u32 %v321, 7
    %v323 = vsub.s32 0, %v322
    %v324 = vrot.slane %v319, %v323
    %v325 = vlaneseq
    %v326 = vshrl.u32 %v325, 7
    %v327 = vsub.s32 1, %v326
    %v328 = vrot.slane %v319, %v327
    %v331 = vsub.f32 %v299, %v324
    %v332 = vsub.f32 %v300, %v328
    %v333 = vmul.f32 %v331, 1.442695
    %v334 = vpow.pop %v333
    %v335 = vmul.f32 %v332, 1.442695
    %v336 = vpow.pop %v335
    %339 = vset.pattern.permute.xlu0 0
    %340 = vperm.xlu0 %339, %v334
    %v341 = vpop.permute.xlu0 %340
    %342 = vset.pattern.permute.xlu0 0
    %343 = vperm.xlu0 %342, %v336
    %v344 = vpop.permute.xlu0 %343
    %v345 = vlaneseq
    %v346 = vshrl.u32 %v345, 7
    %v347 = vsub.s32 %v304, %v346
    %v348 = vrot.slane %v341, %v347
    %v349 = vlaneseq
    %v350 = vshrl.u32 %v349, 7
    %v351 = vsub.s32 %v304, %v350
    %v352 = vrot.slane %v344, %v351
    %v353 = vsel %vm313, %v352, %v348
    %v355 = vsel %vm316, %v353, 0.0
    %356 = vadd.xlane.f32.xlu0 %v355
    %v357 = vpop.xlane.xlu0 %356
    %v358 = vrcp.pop %v357
    %v360 = vlaneseq
    %v361 = vshrl.u32 %v360, 7
    %v362 = vsub.s32 0, %v361
    %v363 = vrot.slane %v358, %v362
    %v364 = vlaneseq
    %v365 = vshrl.u32 %v364, 7
    %v366 = vsub.s32 1, %v365
    %v367 = vrot.slane %v358, %v366
    %v370 = vmul.f32 %v334, %v363
    %v371 = vmul.f32 %v336, %v367
    %373 = vset.pattern.permute.xlu0 0
    %374 = vperm.xlu0 %373, %v370
    %v375 = vpop.permute.xlu0 %374
    %378 = vset.pattern.permute.xlu0 0
    %379 = vperm.xlu0 %378, %v371
    %v380 = vpop.permute.xlu0 %379
    %v382 = vmul.f32 %v72, %v375
    %v383 = vmul.f32 %v73, %v380
    %v384 = vsel %vm79, %v382, 0.0
    %v385 = vrot.slane %v384, 4
    %v386 = vadd.f32 %v384, %v385
    %v387 = vrot.slane %v386, 2
    %v388 = vadd.f32 %v386, %v387
    %v389 = vrot.slane %v388, 1
    %v390 = vadd.f32 %v388, %v389
    %v391 = vsel %vm79, %v383, 0.0
    %v392 = vrot.slane %v391, 4
    %v393 = vadd.f32 %v391, %v392
    %v394 = vrot.slane %v393, 2
    %v395 = vadd.f32 %v393, %v394
    %v396 = vrot.slane %v395, 1
    %v397 = vadd.f32 %v395, %v396
    %v400 = vsel %vm313, %v397, %v390
    %vm402 = vcmask 254976
    %403 = vst.msk [vmem:[#allocation9] sm:$0x3] %vm402, %v400
    %v404 = vlaneseq
    %v405 = vshrl.u32 %v404, 7
    %v406 = vsub.s32 %v304, %v405
    %v407 = vrot.slane %v375, %v406
    %v408 = vlaneseq
    %v409 = vshrl.u32 %v408, 7
    %v410 = vsub.s32 %v304, %v409
    %v411 = vrot.slane %v380, %v410
    %v412 = vsel %vm313, %v411, %v407
    %414 = vst.msk [vmem:[#allocation10] sm:$0x3] %vm316, %v412
    // Predicated region
    $region42: #{tpu_custom_call.1} parent=1 // pred_check
      _
    $region43: #{tpu_custom_call.1} parent=1 // pred_check_branch
      %416 = sbr.rel (0) target = $region45
    $region44: #{tpu_custom_call.1} parent=1 // pred_region
      %s418 = ssub.s32 32, 32
      %419 = vsyncadd [#allocation5], %s418
      %s421 = sshll.u32 [#allocation9], 4
      %s422 = int_to_ptr.vmem [resolvable:$true] %s421
      %424 = dma.vmem_to_hbm [thread:$0]  %s422, 32, %s7, [#allocation5]
    $region45: #{tpu_custom_call.1} parent=1 // pred_fallthru
      _
    // Predicated region
    $region46: #{tpu_custom_call.1} parent=1 // pred_check
      _
    $region47: #{tpu_custom_call.1} parent=1 // pred_check_branch
      %426 = sbr.rel (0) target = $region49
    $region48: #{tpu_custom_call.1} parent=1 // pred_region
      %s428 = ssub.s32 32, 32
      %429 = vsyncadd [#allocation11], %s428
      %s431 = sshll.u32 [#allocation10], 4
      %s432 = int_to_ptr.vmem [resolvable:$true] %s431
      %434 = dma.vmem_to_hbm [thread:$0]  %s432, 32, %s8, [#allocation11]
    $region49: #{tpu_custom_call.1} parent=1 // pred_fallthru
      _
    // Predicated region
    $region50: #{tpu_custom_call.1} parent=1 // pred_check
      _
    $region51: #{tpu_custom_call.1} parent=1 // pred_check_branch
      %436 = sbr.rel (0) target = $region53
    $region52: #{tpu_custom_call.1} parent=1 // pred_region
      %437 = dma.done [#allocation5], 32
    $region53: #{tpu_custom_call.1} parent=1 // pred_fallthru
      _
    // Predicated region
    $region54: #{tpu_custom_call.1} parent=1 // pred_check
      _
    $region55: #{tpu_custom_call.1} parent=1 // pred_check_branch
      %439 = sbr.rel (0) target = $region57
    $region56: #{tpu_custom_call.1} parent=1 // pred_region
      %440 = dma.done [#allocation11], 32
    $region57: #{tpu_custom_call.1} parent=1 // pred_fallthru
      _
    %441 = vsyncpa [#allocation4], 1
    %442 = vsyncpa [#allocation7], 1
    %443 = vsyncpa [#allocation5], 1
    %444 = vsyncpa [#allocation11], 1

</llo_original>
